<compile_context>
chip_gen: v5e
topology: v5e:2x2
jax: 0.10.0
libtpu: 0.0.40
codegen_flags: <defaults>
</compile_context>

<pallas_src>
import jax
import jax.numpy as jnp
from jax.experimental import pallas as pl
from jax.experimental.pallas import tpu as pltpu

NEG_SLOPE = 0.01          # nn.LeakyReLU default negative_slope
LN_EPS = 1e-5             # nn.LayerNorm default eps

TILE_BYTES = 8 << 20      # per x pipeline buffer (Pallas double-buffers it)
CHUNK_BYTES = 1 << 20     # in-kernel strip-mine granule for the running max
VMEM_LIMIT = 32 << 20     # explicit scoped-VMEM limit (safe on v5e/v6e/v7x)


def _round_up(a, m):
    return ((a + m - 1) // m) * m


def _round_down(a, m):
    return (a // m) * m


def _layernorm(h, gamma, beta):
    mu = jnp.mean(h, axis=-1, keepdims=True)
    var = jnp.mean((h - mu) ** 2, axis=-1, keepdims=True)   # biased, like PyTorch LN
    return (h - mu) * jax.lax.rsqrt(var + LN_EPS) * gamma + beta


def _leaky_relu(h):
    return jnp.where(h >= 0, h, NEG_SLOPE * h)


def _make_kernel(*, D, r, Nf, tn, chunk, ragged):
    """Build the kernel with all shape knowledge baked in statically."""
    nchunks = tn // chunk

    def kernel(x_ref, w1_ref, w2_ref, w3_ref, wh_ref, vec_ref, out_ref, pool_ref):
        n = pl.program_id(1)
        n_last = pl.num_programs(1) - 1

        # ---- running max over the (folded) points axis -----------------------
        @pl.when(n == 0)
        def _():
            pool_ref[...] = jnp.full(pool_ref.shape, -jnp.inf, dtype=jnp.float32)

        def tile_max(masked):
            def body(c, acc):
                start = pl.multiple_of(c * chunk, chunk)
                blk = x_ref[:, pl.ds(start, chunk), :]
                if masked:
                    row = (n * tn + start
                           + jax.lax.broadcasted_iota(jnp.int32, blk.shape, 1))
                    blk = jnp.where(row < Nf, blk, -jnp.inf)
                return jnp.maximum(acc, jnp.max(blk, axis=1))
            return jax.lax.fori_loop(0, nchunks, body, pool_ref[...],
                                     unroll=nchunks <= 8)

        if not ragged:
            pool_ref[...] = tile_max(False)
        else:
            @pl.when(n < n_last)         # hot path: full tiles, no masking work
            def _():
                pool_ref[...] = tile_max(False)

            @pl.when(n == n_last)        # ragged last tile: mask garbage to -inf
            def _():
                pool_ref[...] = tile_max(True)

        # ---- MLP + heads once the pooled max is complete ----------------------
        @pl.when(n == n_last)
        def _():
            d2 = w1_ref.shape[1]
            d4 = w2_ref.shape[1]
            d8 = w3_ref.shape[1]
            V = vec_ref[...]            # (10, d2): biases / gammas / betas, padded

            p = pool_ref[...]           # (tb, r*D)
            h = p[:, 0:D]               # undo the lane fold with r-1 extra maxes
            for i in range(1, r):
                h = jnp.maximum(h, p[:, i * D:(i + 1) * D])

            # block 1: Linear(D -> D/2) + LayerNorm + LeakyReLU
            h = jnp.dot(h, w1_ref[...], preferred_element_type=jnp.float32) + V[0:1, :d2]
            h = _leaky_relu(_layernorm(h, V[1:2, :d2], V[2:3, :d2]))
            # block 2: Linear(D/2 -> D/4) + LayerNorm + LeakyReLU
            h = jnp.dot(h, w2_ref[...], preferred_element_type=jnp.float32) + V[3:4, :d4]
            h = _leaky_relu(_layernorm(h, V[4:5, :d4], V[5:6, :d4]))
            # block 3: Linear(D/4 -> D/8) + LayerNorm + LeakyReLU
            h = jnp.dot(h, w3_ref[...], preferred_element_type=jnp.float32) + V[6:7, :d8]
            h = _leaky_relu(_layernorm(h, V[7:8, :d8], V[8:9, :d8]))

            # fused heads: cols 0-3 rot, 4-6 trans, 7 zero pad
            ht = jnp.dot(h, wh_ref[...], preferred_element_type=jnp.float32) + V[9:10, :8]

            rot = ht[:, 0:4]
            inv = jax.lax.rsqrt(jnp.sum(rot * rot, axis=1, keepdims=True))
            col = jax.lax.broadcasted_iota(jnp.int32, ht.shape, 1)
            out_ref[...] = jnp.where(col < 4, ht * inv, ht).astype(out_ref.dtype)

    return kernel


def pack_params(params, D):
    """Collapse the 16 module parameters into 5 kernel operands."""
    (w1, b1, g1, be1, w2, b2, g2, be2, w3, b3, g3, be3, wr, br, wt, bt) = params
    d2, d8 = D // 2, D // 8
    assert d2 >= 8, "n_emb_dims must be >= 16"

    # fused head weight: wr | wt | zero pad -> (D/8, 8)
    wh = jnp.concatenate([wr, wt, jnp.zeros((d8, 1), jnp.float32)], axis=1)

    def row(v):
        v = jnp.reshape(v, (-1,)).astype(jnp.float32)
        return jnp.pad(v, (0, d2 - v.shape[0]))[None, :]

    bh = jnp.concatenate([jnp.reshape(br, (-1,)), jnp.reshape(bt, (-1,)),
                          jnp.zeros((1,), jnp.float32)])   # (8,)
    vecs = jnp.concatenate(
        [row(b1), row(g1), row(be1),
         row(b2), row(g2), row(be2),
         row(b3), row(g3), row(be3),
         row(bh)], axis=0)                                  # (10, d2)
    return w1, w2, w3, wh, vecs


def generator_forward(x, params, *, tb=None, tn=None):
    """Returns (rotation, translation) for x of shape (B, N, n_emb_dims)."""
    B, N, D = x.shape
    assert D % 8 == 0 and D >= 16, "n_emb_dims must be a multiple of 8 and >= 16"
    d2, d4, d8 = D // 2, D // 4, D // 8
    w1, w2, w3, wh, vecs = pack_params(params, D)

    # ---- lane-fold the feature dim toward 128 lanes (free contiguous reshape)
    r = 1
    if D < 128 and 128 % D == 0:
        r = 128 // D
        while r > 1 and N % r != 0:
            r //= 2
    D_eff = r * D
    Nf = N // r
    if r > 1:
        x = jnp.reshape(x, (B, Nf, D_eff))      # merge of trailing dims: no HBM copy
    D_pad = _round_up(D_eff, 128)               # lane-padded width actually held in VMEM

    # ---- batch tile -----------------------------------------------------------
    if tb is None:
        if B <= 8:
            tb = B
        else:
            tb = min(128, _round_down(B, 8))
            if B >= 16:                          # >= 2 batch tiles feeds both v7x cores
                tb = min(tb, _round_up((B + 1) // 2, 8))
    assert tb == B or tb % 8 == 0, "tb must be a multiple of 8 (or equal B)"
    grid_b = pl.cdiv(B, tb)

    # ---- points tile + in-kernel chunking (lane-padded VMEM accounting) --------
    bytes_per_row = tb * D_pad * 4
    chunk = max(8, _round_down(CHUNK_BYTES // bytes_per_row, 8))
    if tn is None:
        if Nf <= chunk:
            tn = chunk = Nf                      # one tile, one chunk
        else:
            tn_cap = max(chunk, _round_down(TILE_BYTES // bytes_per_row, chunk))
            tn = min(tn_cap, _round_down(Nf, chunk))
    else:
        if tn % chunk != 0:
            chunk = tn                           # user override: single chunk per tile
    assert tn == Nf or tn % 8 == 0, "tn must be a multiple of 8 (or equal N_folded)"
    grid_n = pl.cdiv(Nf, tn)
    ragged = (Nf % tn) != 0                      # only the last point-tile needs masking

    kernel = _make_kernel(D=D, r=r, Nf=Nf, tn=tn, chunk=chunk, ragged=ragged)

    param_bytes = (D * d2 + d2 * d4 + d4 * d8 + d8 * 8 + 10 * d2) * 4
    cost = pl.CostEstimate(
        flops=B * N * D + 2 * B * (D * d2 + d2 * d4 + d4 * d8 + d8 * 8),
        transcendentals=4 * B,
        bytes_accessed=B * N * D * 4 + param_bytes + B * 8 * 4,
    )

    out = pl.pallas_call(
        kernel,
        out_shape=jax.ShapeDtypeStruct((B, 8), jnp.float32),
        grid_spec=pltpu.PrefetchScalarGridSpec(
            num_scalar_prefetch=0,
            grid=(grid_b, grid_n),
            in_specs=[
                pl.BlockSpec((tb, tn, D_eff), lambda b, n: (b, n, 0)),   # x tile
                pl.BlockSpec((D, d2), lambda b, n: (0, 0)),              # w1 (resident)
                pl.BlockSpec((d2, d4), lambda b, n: (0, 0)),             # w2
                pl.BlockSpec((d4, d8), lambda b, n: (0, 0)),             # w3
                pl.BlockSpec((d8, 8), lambda b, n: (0, 0)),              # wr|wt|pad
                pl.BlockSpec((10, d2), lambda b, n: (0, 0)),             # packed vectors
            ],
            out_specs=pl.BlockSpec((tb, 8), lambda b, n: (b, 0)),        # rot|trans|pad
            scratch_shapes=[pltpu.VMEM((tb, D_eff), jnp.float32)],       # running max
        ),
        compiler_params=pltpu.CompilerParams(
            dimension_semantics=("parallel", "arbitrary"),
            vmem_limit_bytes=VMEM_LIMIT),
        cost_estimate=cost,
    )(x, w1, w2, w3, wh, vecs)

    rot = out[:, 0:4]
    trans = out[:, 4:7]
    return rot, trans


def init_params(key, n_emb_dims):
    d = n_emb_dims
    layer_dims = [(d, d // 2), (d // 2, d // 4), (d // 4, d // 8)]
    head_dims = [(d // 8, 4), (d // 8, 3)]
    keys = jax.random.split(key, 4 * len(layer_dims) + 2 * len(head_dims))
    ki = iter(keys)

    params = []
    for din, dout in layer_dims:
        w = jax.random.normal(next(ki), (din, dout), jnp.float32) * 0.1
        b = jax.random.normal(next(ki), (1, dout), jnp.float32) * 0.1
        gamma = 1.0 + jax.random.normal(next(ki), (1, dout), jnp.float32) * 0.1
        beta = jax.random.normal(next(ki), (1, dout), jnp.float32) * 0.1
        params += [w, b, gamma, beta]
    for din, dout in head_dims:
        w = jax.random.normal(next(ki), (din, dout), jnp.float32) * 0.1
        b = jax.random.normal(next(ki), (1, dout), jnp.float32) * 0.1
        params += [w, b]
    return tuple(params)


def reference_forward(x, params):
    (w1, b1, g1, be1, w2, b2, g2, be2, w3, b3, g3, be3, wr, br, wt, bt) = params
    h = jnp.max(x, axis=1)
    for w, b, g, be in ((w1, b1, g1, be1), (w2, b2, g2, be2), (w3, b3, g3, be3)):
        h = h @ w + b
        h = _leaky_relu(_layernorm(h, g, be))
    rot = h @ wr + br
    trans = h @ wt + bt
    rot = rot / jnp.linalg.norm(rot, axis=1, keepdims=True)
    return rot, trans


if __name__ == "__main__":
    import numpy as np

    n_emb_dims = 32   # must be a multiple of 8 and >= 16
    key = jax.random.PRNGKey(0)
    kx1, kx2, kx3, kp = jax.random.split(key, 4)
    params = init_params(kp, n_emb_dims)

    def check(x, **kw):
        rot, trans = generator_forward(x, params, **kw)
        jax.block_until_ready((rot, trans))
        rot_ref, trans_ref = reference_forward(x, params)
        np.testing.assert_allclose(np.asarray(rot), np.asarray(rot_ref),
                                   rtol=1e-4, atol=1e-5)
        np.testing.assert_allclose(np.asarray(trans), np.asarray(trans_ref),
                                   rtol=1e-4, atol=1e-5)

    # 1) tiny single-block path (exercises the lane fold, r = 4)
    check(jax.random.normal(kx1, (2, 8, n_emb_dims), jnp.float32))

    # 2) ragged N and ragged B with explicit small tiles: exercises the
    #    in-kernel -inf masking of the last point tile and dropped OOB
    #    batch-tile writes (no wrapper-side padding of x anywhere).
    check(jax.random.normal(kx2, (24, 37, n_emb_dims), jnp.float32), tb=8, tn=8)

    # 3) default tiling with the >=2-batch-tile heuristic + lane fold.
    check(jax.random.normal(kx3, (16, 64, n_emb_dims), jnp.float32))

    print("KERNEL_OK")
</pallas_src>

<mosaic_0001>
module attributes {stable_mosaic.version = 11 : i64} {
  func.func @kernel(%arg0: i32, %arg1: i32, %arg2: memref<2x2x128xf32, #tpu.memory_space<vmem>>, %arg3: memref<32x16xf32, #tpu.memory_space<vmem>>, %arg4: memref<16x8xf32, #tpu.memory_space<vmem>>, %arg5: memref<8x4xf32, #tpu.memory_space<vmem>>, %arg6: memref<4x8xf32, #tpu.memory_space<vmem>>, %arg7: memref<10x16xf32, #tpu.memory_space<vmem>>, %arg8: memref<2x8xf32, #tpu.memory_space<vmem>>, %arg9: memref<2x128xf32, #tpu.memory_space<vmem>>) attributes {dimension_semantics = [#tpu.dimension_semantics<parallel>, #tpu.dimension_semantics<arbitrary>], iteration_bounds = array<i64: 1, 1>, scalar_prefetch = 0 : i64, scratch_operands = 1 : i64, tpu.core_type = #tpu.core_type<tc>, window_params = [{transform_indices = @transform_0, window_bounds = array<i64: 2, 2, 128>}, {pipeline_mode = #tpu.pipeline_mode<synchronous>, transform_indices = @transform_1, window_bounds = array<i64: 32, 16>}, {pipeline_mode = #tpu.pipeline_mode<synchronous>, transform_indices = @transform_2, window_bounds = array<i64: 16, 8>}, {pipeline_mode = #tpu.pipeline_mode<synchronous>, transform_indices = @transform_3, window_bounds = array<i64: 8, 4>}, {pipeline_mode = #tpu.pipeline_mode<synchronous>, transform_indices = @transform_4, window_bounds = array<i64: 4, 8>}, {pipeline_mode = #tpu.pipeline_mode<synchronous>, transform_indices = @transform_5, window_bounds = array<i64: 10, 16>}, {transform_indices = @transform_6, window_bounds = array<i64: 2, 8>}]} {
    %c0_i32 = arith.constant 0 : i32
    %0 = arith.cmpi eq, %arg1, %c0_i32 : i32
    %1 = arith.extui %0 : i1 to i32
    %c0_i32_0 = arith.constant 0 : i32
    %2 = arith.cmpi ne, %1, %c0_i32_0 : i32
    scf.if %2 {
      %cst_9 = arith.constant 0xFF800000 : f32
      %14 = vector.broadcast %cst_9 : f32 to vector<2x128xf32>
      %c0_10 = arith.constant 0 : index
      %c0_11 = arith.constant 0 : index
      %15 = vector.load %arg9[%c0_10, %c0_11] : memref<2x128xf32, #tpu.memory_space<vmem>>, vector<2x128xf32>
      tpu.vector_store %arg9[%c0_10, %c0_11], %14 {strides = array<i32>} : memref<2x128xf32, #tpu.memory_space<vmem>>, vector<2x128xf32>,
    } else {
    }
    %c0 = arith.constant 0 : index
    %c0_1 = arith.constant 0 : index
    %3 = vector.load %arg9[%c0, %c0_1] : memref<2x128xf32, #tpu.memory_space<vmem>>, vector<2x128xf32>
    %c0_i32_2 = arith.constant 0 : i32
    %c2_i32 = arith.constant 2 : i32
    %4 = arith.muli %c0_i32_2, %c2_i32 : i32
    %5 = tpu.assume_multiple %4, 2 : i32
    %c0_3 = arith.constant 0 : index
    %6 = arith.index_cast %5 : i32 to index
    %c0_4 = arith.constant 0 : index
    %7 = vector.load %arg2[%c0_3, %6, %c0_4] : memref<2x2x128xf32, #tpu.memory_space<vmem>>, vector<2x2x128xf32>
    %cst = arith.constant dense<0xFF800000> : vector<2x128xf32>
    %8 = vector.multi_reduction <maximumf>, %7, %cst [1] : vector<2x2x128xf32> to vector<2x128xf32>
    %9 = arith.maximumf %3, %8 : vector<2x128xf32>
    %c1_i32 = arith.constant 1 : i32
    %c0_5 = arith.constant 0 : index
    %c0_6 = arith.constant 0 : index
    %10 = vector.load %arg9[%c0_5, %c0_6] : memref<2x128xf32, #tpu.memory_space<vmem>>, vector<2x128xf32>
    tpu.vector_store %arg9[%c0_5, %c0_6], %9 {strides = array<i32>} : memref<2x128xf32, #tpu.memory_space<vmem>>, vector<2x128xf32>,
    %c0_i32_7 = arith.constant 0 : i32
    %11 = arith.cmpi eq, %arg1, %c0_i32_7 : i32
    %12 = arith.extui %11 : i1 to i32
    %c0_i32_8 = arith.constant 0 : i32
    %13 = arith.cmpi ne, %12, %c0_i32_8 : i32
    scf.if %13 {
      %c0_9 = arith.constant 0 : index
      %c0_10 = arith.constant 0 : index
      %14 = vector.load %arg7[%c0_9, %c0_10] : memref<10x16xf32, #tpu.memory_space<vmem>>, vector<10x16xf32>
      %c0_11 = arith.constant 0 : index
      %c0_12 = arith.constant 0 : index
      %15 = vector.load %arg9[%c0_11, %c0_12] : memref<2x128xf32, #tpu.memory_space<vmem>>, vector<2x128xf32>
      %16 = vector.extract_strided_slice %15 {offsets = [0, 0], sizes = [2, 32], strides = [1, 1]} : vector<2x128xf32> to vector<2x32xf32>
      %17 = vector.extract_strided_slice %15 {offsets = [0, 32], sizes = [2, 32], strides = [1, 1]} : vector<2x128xf32> to vector<2x32xf32>
      %18 = arith.maximumf %16, %17 : vector<2x32xf32>
      %19 = vector.extract_strided_slice %15 {offsets = [0, 64], sizes = [2, 32], strides = [1, 1]} : vector<2x128xf32> to vector<2x32xf32>
      %20 = arith.maximumf %18, %19 : vector<2x32xf32>
      %21 = vector.extract_strided_slice %15 {offsets = [0, 96], sizes = [2, 32], strides = [1, 1]} : vector<2x128xf32> to vector<2x32xf32>
      %22 = arith.maximumf %20, %21 : vector<2x32xf32>
      %c0_13 = arith.constant 0 : index
      %c0_14 = arith.constant 0 : index
      %23 = vector.load %arg3[%c0_13, %c0_14] : memref<32x16xf32, #tpu.memory_space<vmem>>, vector<32x16xf32>
      %cst_15 = arith.constant dense<0.000000e+00> : vector<2x16xf32>
      %24 = tpu.matmul %22, %23, %cst_15 {dimension_numbers = #tpu.dot_dimension_numbers<[1], [0], [0], [1], [0, 0, 1, 1], [], []>} : vector<2x32xf32>, vector<32x16xf32>, vector<2x16xf32> -> vector<2x16xf32>
      %25 = vector.extract_strided_slice %14 {offsets = [0, 0], sizes = [1, 16], strides = [1, 1]} : vector<10x16xf32> to vector<1x16xf32>
      %26 = vector.broadcast %25 : vector<1x16xf32> to vector<2x16xf32>
      %27 = arith.addf %24, %26 : vector<2x16xf32>
      %28 = vector.extract_strided_slice %14 {offsets = [1, 0], sizes = [1, 16], strides = [1, 1]} : vector<10x16xf32> to vector<1x16xf32>
      %29 = vector.extract_strided_slice %14 {offsets = [2, 0], sizes = [1, 16], strides = [1, 1]} : vector<10x16xf32> to vector<1x16xf32>
      %cst_16 = arith.constant dense<0.000000e+00> : vector<2xf32>
      %30 = vector.multi_reduction <add>, %27, %cst_16 [1] : vector<2x16xf32> to vector<2xf32>
      %31 = vector.shape_cast %30 : vector<2xf32> to vector<2x1xf32>
      %cst_17 = arith.constant 1.600000e+01 : f32
      %32 = vector.broadcast %cst_17 : f32 to vector<2x1xf32>
      %33 = arith.divf %31, %32 : vector<2x1xf32>
      %34 = vector.broadcast %33 : vector<2x1xf32> to vector<2x16xf32>
      %35 = arith.subf %27, %34 : vector<2x16xf32>
      %36 = arith.mulf %35, %35 : vector<2x16xf32>
      %cst_18 = arith.constant dense<0.000000e+00> : vector<2xf32>
      %37 = vector.multi_reduction <add>, %36, %cst_18 [1] : vector<2x16xf32> to vector<2xf32>
      %38 = vector.shape_cast %37 : vector<2xf32> to vector<2x1xf32>
      %cst_19 = arith.constant 1.600000e+01 : f32
      %39 = vector.broadcast %cst_19 : f32 to vector<2x1xf32>
      %40 = arith.divf %38, %39 : vector<2x1xf32>
      %41 = vector.broadcast %33 : vector<2x1xf32> to vector<2x16xf32>
      %42 = arith.subf %27, %41 : vector<2x16xf32>
      %cst_20 = arith.constant 9.99999974E-6 : f32
      %43 = vector.broadcast %cst_20 : f32 to vector<2x1xf32>
      %44 = arith.addf %40, %43 : vector<2x1xf32>
      %45 = math.rsqrt %44 : vector<2x1xf32>
      %46 = vector.broadcast %45 : vector<2x1xf32> to vector<2x16xf32>
      %47 = arith.mulf %42, %46 : vector<2x16xf32>
      %48 = vector.broadcast %28 : vector<1x16xf32> to vector<2x16xf32>
      %49 = arith.mulf %47, %48 : vector<2x16xf32>
      %50 = vector.broadcast %29 : vector<1x16xf32> to vector<2x16xf32>
      %51 = arith.addf %49, %50 : vector<2x16xf32>
      %cst_21 = arith.constant 0.000000e+00 : f32
      %52 = vector.broadcast %cst_21 : f32 to vector<2x16xf32>
      %53 = arith.cmpf oge, %51, %52 : vector<2x16xf32>
      %cst_22 = arith.constant 0.00999999977 : f32
      %54 = vector.broadcast %cst_22 : f32 to vector<2x16xf32>
      %55 = arith.mulf %54, %51 : vector<2x16xf32>
      %56 = arith.select %53, %51, %55 : vector<2x16xi1>, vector<2x16xf32>
      %c0_23 = arith.constant 0 : index
      %c0_24 = arith.constant 0 : index
      %57 = vector.load %arg4[%c0_23, %c0_24] : memref<16x8xf32, #tpu.memory_space<vmem>>, vector<16x8xf32>
      %cst_25 = arith.constant dense<0.000000e+00> : vector<2x8xf32>
      %58 = tpu.matmul %56, %57, %cst_25 {dimension_numbers = #tpu.dot_dimension_numbers<[1], [0], [0], [1], [0, 0, 1, 1], [], []>} : vector<2x16xf32>, vector<16x8xf32>, vector<2x8xf32> -> vector<2x8xf32>
      %59 = vector.extract_strided_slice %14 {offsets = [3, 0], sizes = [1, 8], strides = [1, 1]} : vector<10x16xf32> to vector<1x8xf32>
      %60 = vector.broadcast %59 : vector<1x8xf32> to vector<2x8xf32>
      %61 = arith.addf %58, %60 : vector<2x8xf32>
      %62 = vector.extract_strided_slice %14 {offsets = [4, 0], sizes = [1, 8], strides = [1, 1]} : vector<10x16xf32> to vector<1x8xf32>
      %63 = vector.extract_strided_slice %14 {offsets = [5, 0], sizes = [1, 8], strides = [1, 1]} : vector<10x16xf32> to vector<1x8xf32>
      %cst_26 = arith.constant dense<0.000000e+00> : vector<2xf32>
      %64 = vector.multi_reduction <add>, %61, %cst_26 [1] : vector<2x8xf32> to vector<2xf32>
      %65 = vector.shape_cast %64 : vector<2xf32> to vector<2x1xf32>
      %cst_27 = arith.constant 8.000000e+00 : f32
      %66 = vector.broadcast %cst_27 : f32 to vector<2x1xf32>
      %67 = arith.divf %65, %66 : vector<2x1xf32>
      %68 = vector.broadcast %67 : vector<2x1xf32> to vector<2x8xf32>
      %69 = arith.subf %61, %68 : vector<2x8xf32>
      %70 = arith.mulf %69, %69 : vector<2x8xf32>
      %cst_28 = arith.constant dense<0.000000e+00> : vector<2xf32>
      %71 = vector.multi_reduction <add>, %70, %cst_28 [1] : vector<2x8xf32> to vector<2xf32>
      %72 = vector.shape_cast %71 : vector<2xf32> to vector<2x1xf32>
      %cst_29 = arith.constant 8.000000e+00 : f32
      %73 = vector.broadcast %cst_29 : f32 to vector<2x1xf32>
      %74 = arith.divf %72, %73 : vector<2x1xf32>
      %75 = vector.broadcast %67 : vector<2x1xf32> to vector<2x8xf32>
      %76 = arith.subf %61, %75 : vector<2x8xf32>
      %cst_30 = arith.constant 9.99999974E-6 : f32
      %77 = vector.broadcast %cst_30 : f32 to vector<2x1xf32>
      %78 = arith.addf %74, %77 : vector<2x1xf32>
      %79 = math.rsqrt %78 : vector<2x1xf32>
      %80 = vector.broadcast %79 : vector<2x1xf32> to vector<2x8xf32>
      %81 = arith.mulf %76, %80 : vector<2x8xf32>
      %82 = vector.broadcast %62 : vector<1x8xf32> to vector<2x8xf32>
      %83 = arith.mulf %81, %82 : vector<2x8xf32>
      %84 = vector.broadcast %63 : vector<1x8xf32> to vector<2x8xf32>
      %85 = arith.addf %83, %84 : vector<2x8xf32>
      %cst_31 = arith.constant 0.000000e+00 : f32
      %86 = vector.broadcast %cst_31 : f32 to vector<2x8xf32>
      %87 = arith.cmpf oge, %85, %86 : vector<2x8xf32>
      %cst_32 = arith.constant 0.00999999977 : f32
      %88 = vector.broadcast %cst_32 : f32 to vector<2x8xf32>
      %89 = arith.mulf %88, %85 : vector<2x8xf32>
      %90 = arith.select %87, %85, %89 : vector<2x8xi1>, vector<2x8xf32>
      %c0_33 = arith.constant 0 : index
      %c0_34 = arith.constant 0 : index
      %91 = vector.load %arg5[%c0_33, %c0_34] : memref<8x4xf32, #tpu.memory_space<vmem>>, vector<8x4xf32>
      %cst_35 = arith.constant dense<0.000000e+00> : vector<2x4xf32>
      %92 = tpu.matmul %90, %91, %cst_35 {dimension_numbers = #tpu.dot_dimension_numbers<[1], [0], [0], [1], [0, 0, 1, 1], [], []>} : vector<2x8xf32>, vector<8x4xf32>, vector<2x4xf32> -> vector<2x4xf32>
      %93 = vector.extract_strided_slice %14 {offsets = [6, 0], sizes = [1, 4], strides = [1, 1]} : vector<10x16xf32> to vector<1x4xf32>
      %94 = vector.broadcast %93 : vector<1x4xf32> to vector<2x4xf32>
      %95 = arith.addf %92, %94 : vector<2x4xf32>
      %96 = vector.extract_strided_slice %14 {offsets = [7, 0], sizes = [1, 4], strides = [1, 1]} : vector<10x16xf32> to vector<1x4xf32>
      %97 = vector.extract_strided_slice %14 {offsets = [8, 0], sizes = [1, 4], strides = [1, 1]} : vector<10x16xf32> to vector<1x4xf32>
      %cst_36 = arith.constant dense<0.000000e+00> : vector<2xf32>
      %98 = vector.multi_reduction <add>, %95, %cst_36 [1] : vector<2x4xf32> to vector<2xf32>
      %99 = vector.shape_cast %98 : vector<2xf32> to vector<2x1xf32>
      %cst_37 = arith.constant 4.000000e+00 : f32
      %100 = vector.broadcast %cst_37 : f32 to vector<2x1xf32>
      %101 = arith.divf %99, %100 : vector<2x1xf32>
      %102 = vector.broadcast %101 : vector<2x1xf32> to vector<2x4xf32>
      %103 = arith.subf %95, %102 : vector<2x4xf32>
      %104 = arith.mulf %103, %103 : vector<2x4xf32>
      %cst_38 = arith.constant dense<0.000000e+00> : vector<2xf32>
      %105 = vector.multi_reduction <add>, %104, %cst_38 [1] : vector<2x4xf32> to vector<2xf32>
      %106 = vector.shape_cast %105 : vector<2xf32> to vector<2x1xf32>
      %cst_39 = arith.constant 4.000000e+00 : f32
      %107 = vector.broadcast %cst_39 : f32 to vector<2x1xf32>
      %108 = arith.divf %106, %107 : vector<2x1xf32>
      %109 = vector.broadcast %101 : vector<2x1xf32> to vector<2x4xf32>
      %110 = arith.subf %95, %109 : vector<2x4xf32>
      %cst_40 = arith.constant 9.99999974E-6 : f32
      %111 = vector.broadcast %cst_40 : f32 to vector<2x1xf32>
      %112 = arith.addf %108, %111 : vector<2x1xf32>
      %113 = math.rsqrt %112 : vector<2x1xf32>
      %114 = vector.broadcast %113 : vector<2x1xf32> to vector<2x4xf32>
      %115 = arith.mulf %110, %114 : vector<2x4xf32>
      %116 = vector.broadcast %96 : vector<1x4xf32> to vector<2x4xf32>
      %117 = arith.mulf %115, %116 : vector<2x4xf32>
      %118 = vector.broadcast %97 : vector<1x4xf32> to vector<2x4xf32>
      %119 = arith.addf %117, %118 : vector<2x4xf32>
      %cst_41 = arith.constant 0.000000e+00 : f32
      %120 = vector.broadcast %cst_41 : f32 to vector<2x4xf32>
      %121 = arith.cmpf oge, %119, %120 : vector<2x4xf32>
      %cst_42 = arith.constant 0.00999999977 : f32
      %122 = vector.broadcast %cst_42 : f32 to vector<2x4xf32>
      %123 = arith.mulf %122, %119 : vector<2x4xf32>
      %124 = arith.select %121, %119, %123 : vector<2x4xi1>, vector<2x4xf32>
      %c0_43 = arith.constant 0 : index
      %c0_44 = arith.constant 0 : index
      %125 = vector.load %arg6[%c0_43, %c0_44] : memref<4x8xf32, #tpu.memory_space<vmem>>, vector<4x8xf32>
      %cst_45 = arith.constant dense<0.000000e+00> : vector<2x8xf32>
      %126 = tpu.matmul %124, %125, %cst_45 {dimension_numbers = #tpu.dot_dimension_numbers<[1], [0], [0], [1], [0, 0, 1, 1], [], []>} : vector<2x4xf32>, vector<4x8xf32>, vector<2x8xf32> -> vector<2x8xf32>
      %127 = vector.extract_strided_slice %14 {offsets = [9, 0], sizes = [1, 8], strides = [1, 1]} : vector<10x16xf32> to vector<1x8xf32>
      %128 = vector.broadcast %127 : vector<1x8xf32> to vector<2x8xf32>
      %129 = arith.addf %126, %128 : vector<2x8xf32>
      %130 = vector.extract_strided_slice %129 {offsets = [0, 0], sizes = [2, 4], strides = [1, 1]} : vector<2x8xf32> to vector<2x4xf32>
      %131 = arith.mulf %130, %130 : vector<2x4xf32>
      %cst_46 = arith.constant dense<0.000000e+00> : vector<2xf32>
      %132 = vector.multi_reduction <add>, %131, %cst_46 [1] : vector<2x4xf32> to vector<2xf32>
      %133 = vector.shape_cast %132 : vector<2xf32> to vector<2x1xf32>
      %134 = math.rsqrt %133 : vector<2x1xf32>
      %135 = tpu.iota {dimensions = array<i32: 1>} : vector<2x8xi32>
      %c4_i32 = arith.constant 4 : i32
      %136 = vector.broadcast %c4_i32 : i32 to vector<2x8xi32>
      %137 = arith.cmpi slt, %135, %136 : vector<2x8xi32>
      %138 = vector.broadcast %134 : vector<2x1xf32> to vector<2x8xf32>
      %139 = arith.mulf %129, %138 : vector<2x8xf32>
      %140 = arith.select %137, %139, %129 : vector<2x8xi1>, vector<2x8xf32>
      %c0_47 = arith.constant 0 : index
      %c0_48 = arith.constant 0 : index
      %141 = vector.load %arg8[%c0_47, %c0_48] : memref<2x8xf32, #tpu.memory_space<vmem>>, vector<2x8xf32>
      tpu.vector_store %arg8[%c0_47, %c0_48], %140 {strides = array<i32>} : memref<2x8xf32, #tpu.memory_space<vmem>>, vector<2x8xf32>,
    } else {
    }
    return
  }
  func.func @transform_0(%arg0: i32, %arg1: i32) -> (i32, i32, i32) {
    %c0_i32 = arith.constant 0 : i32
    %c0_i32_0 = arith.constant 0 : i32
    return %arg0, %arg1, %c0_i32 : i32, i32, i32
  }
  func.func @transform_1(%arg0: i32, %arg1: i32) -> (i32, i32) {
    %c0_i32 = arith.constant 0 : i32
    %c0_i32_0 = arith.constant 0 : i32
    %c0_i32_1 = arith.constant 0 : i32
    return %c0_i32, %c0_i32_0 : i32, i32
  }
  func.func @transform_2(%arg0: i32, %arg1: i32) -> (i32, i32) {
    %c0_i32 = arith.constant 0 : i32
    %c0_i32_0 = arith.constant 0 : i32
    %c0_i32_1 = arith.constant 0 : i32
    return %c0_i32, %c0_i32_0 : i32, i32
  }
  func.func @transform_3(%arg0: i32, %arg1: i32) -> (i32, i32) {
    %c0_i32 = arith.constant 0 : i32
    %c0_i32_0 = arith.constant 0 : i32
    %c0_i32_1 = arith.constant 0 : i32
    return %c0_i32, %c0_i32_0 : i32, i32
  }
  func.func @transform_4(%arg0: i32, %arg1: i32) -> (i32, i32) {
    %c0_i32 = arith.constant 0 : i32
    %c0_i32_0 = arith.constant 0 : i32
    %c0_i32_1 = arith.constant 0 : i32
    return %c0_i32, %c0_i32_0 : i32, i32
  }
  func.func @transform_5(%arg0: i32, %arg1: i32) -> (i32, i32) {
    %c0_i32 = arith.constant 0 : i32
    %c0_i32_0 = arith.constant 0 : i32
    %c0_i32_1 = arith.constant 0 : i32
    return %c0_i32, %c0_i32_0 : i32, i32
  }
  func.func @transform_6(%arg0: i32, %arg1: i32) -> (i32, i32) {
    %c0_i32 = arith.constant 0 : i32
    %c0_i32_0 = arith.constant 0 : i32
    return %arg0, %c0_i32 : i32, i32
  }
}

</mosaic_0001>

<llo_original>
// kernel: tpu_custom_call.1
$region0: #{tpu_custom_call.1}
  #allocation0 [shape = 'u32[]', space=smem, size = 0x4, offset = 0x4, fixed_abs, tag = 'smem constant byte address 0x4 - core index']
  #allocation1 [shape = 'u32[72,128]{1,0:T(1,128)}', space=vmem, size = 0x9000, scoped, tag = 'internal scratch']
  #allocation2 [shape = 'f32[2,128]{1,0:T(2,128)}', space=vmem, size = 0x400, scoped, tag = 'scratch operand']
  %s0 = inlined_call_operand.vmem [shape: f32[2,2,128], index: 0, kind: input, shape index: {}]
  %s1 = inlined_call_operand.vmem [shape: f32[32,16], index: 1, kind: input, shape index: {}]
  %s2 = inlined_call_operand.vmem [shape: f32[16,8], index: 2, kind: input, shape index: {}]
  %s3 = inlined_call_operand.vmem [shape: f32[8,4], index: 3, kind: input, shape index: {}]
  %s4 = inlined_call_operand.vmem [shape: f32[4,8], index: 4, kind: input, shape index: {}]
  %s5 = inlined_call_operand.vmem [shape: f32[10,16], index: 5, kind: input, shape index: {}]
  %s6 = inlined_call_operand.hbm [shape: f32[2,8], index: 6, kind: output, shape index: {}]
  %s7 = sld [smem:[#allocation0]]
  $region42: #{tpu_custom_call.1} parent=0
    _
  %s9 = ssub.s32 1, %s7
  %s10 = scalar_select 0, %s9, %s7
  $region1: #{tpu_custom_call.1} parent=0
    #allocation3 [shape = 'u8[1024]{0}', space=vmem, size = 0x400, scoped, tag = 'output window, operand 0, single buffered']
    #allocation4 [shape = 's32[1]{0}', space=sflag, size = 0x4, scoped, tag = 'scoped memory for tpu_custom_call.1']
    %11 = vsyncpa [#allocation4], 0
    // Predicated region
    $region2: #{tpu_custom_call.1} parent=1 // pred_check
      _
    $region3: #{tpu_custom_call.1} parent=1 // pred_check_branch
      %13 = sbr.rel (0) target = $region5
    $region4: #{tpu_custom_call.1} parent=1 // pred_region
      _
    $region5: #{tpu_custom_call.1} parent=1 // pred_fallthru
      _
    // Predicated region
    $region6: #{tpu_custom_call.1} parent=1 // pred_check
      _
    $region7: #{tpu_custom_call.1} parent=1 // pred_check_branch
      %15 = sbr.rel (0) target = $region9
    $region8: #{tpu_custom_call.1} parent=1 // pred_region
      _
    $region9: #{tpu_custom_call.1} parent=1 // pred_fallthru
      _
    // Predicated region
    $region10: #{tpu_custom_call.1} parent=1 // pred_check
      _
    $region11: #{tpu_custom_call.1} parent=1 // pred_check_branch
      %17 = sbr.rel (0) target = $region13
    $region12: #{tpu_custom_call.1} parent=1 // pred_region
      _
    $region13: #{tpu_custom_call.1} parent=1 // pred_fallthru
      _
    // Predicated region
    $region14: #{tpu_custom_call.1} parent=1 // pred_check
      _
    $region15: #{tpu_custom_call.1} parent=1 // pred_check_branch
      %19 = sbr.rel (0) target = $region17
    $region16: #{tpu_custom_call.1} parent=1 // pred_region
      _
    $region17: #{tpu_custom_call.1} parent=1 // pred_fallthru
      _
    // Predicated region
    $region18: #{tpu_custom_call.1} parent=1 // pred_check
      _
    $region19: #{tpu_custom_call.1} parent=1 // pred_check_branch
      %21 = sbr.rel (0) target = $region21
    $region20: #{tpu_custom_call.1} parent=1 // pred_region
      _
    $region21: #{tpu_custom_call.1} parent=1 // pred_fallthru
      _
    // Predicated region
    $region22: #{tpu_custom_call.1} parent=1 // pred_check
      _
    $region23: #{tpu_custom_call.1} parent=1 // pred_check_branch
      %23 = sbr.rel (0) target = $region25
    $region24: #{tpu_custom_call.1} parent=1 // pred_region
      _
    $region25: #{tpu_custom_call.1} parent=1 // pred_fallthru
      _
    %p24 = scmp.eq.s32.totalorder 0, 0
    // Predicated region
    $region26: #{tpu_custom_call.1} parent=1 // pred_check
      %p25 = pneg %p24
    $region27: #{tpu_custom_call.1} parent=1 // pred_check_branch
      %27 = sbr.rel (%p25) target = $region29
    $region28: #{tpu_custom_call.1} parent=1 // pred_region
      %28 = vst [vmem:[#allocation2] sm:$0x3] -inf
    $region29: #{tpu_custom_call.1} parent=1 // pred_fallthru
      _
    %v29 = vld [vmem:[#allocation2] sm:$0x3]
    %v30 = vld [vmem:[%s0] sm:$0x3]
    %v31 = vld [vmem:[%s0 + $0x2] sm:$0x3]
    %vm32 = vcmask 1041408
    %v33 = vsel %vm32, %v30, -inf
    %v34 = vrot.slane %v33, 4
    %v35 = vmax.f32 %v33, %v34
    %v36 = vrot.slane %v35, 2
    %v37 = vmax.f32 %v35, %v36
    %v38 = vrot.slane %v37, 1
    %v39 = vmax.f32 %v37, %v38
    %v40 = vsel %vm32, %v31, -inf
    %v41 = vrot.slane %v40, 4
    %v42 = vmax.f32 %v40, %v41
    %v43 = vrot.slane %v42, 2
    %v44 = vmax.f32 %v42, %v43
    %v45 = vrot.slane %v44, 1
    %v46 = vmax.f32 %v44, %v45
    %vm49 = vcmask 1041409
    %v50 = vsel %vm49, %v46, %v39
    %v52 = vmax.f32 %v29, %v50
    %53 = vst [vmem:[#allocation2] sm:$0x3] %v52
    // Predicated region
    $region30: #{tpu_custom_call.1} parent=1 // pred_check
      %p54 = pneg %p24
    $region31: #{tpu_custom_call.1} parent=1 // pred_check_branch
      %56 = sbr.rel (%p54) target = $region33
    $region32: #{tpu_custom_call.1} parent=1 // pred_region
      %v57 = vld [vmem:[%s5] sm:$0xff]
      %v58 = vld [vmem:[%s5 + $0x8] sm:$0x3]
      %v59 = vld [vmem:[#allocation2] sm:$0x3]
      %61 = vrot.lane.b32.xlu0 %v59, 96
      %v62 = vpop.permute.xlu0 %61
      %v64 = vmax.f32 %v59, %v62
      %65 = vrot.lane.b32.xlu0 %v59, 64
      %v66 = vpop.permute.xlu0 %65
      %v68 = vmax.f32 %v64, %v66
      %69 = vrot.lane.b32.xlu0 %v59, 32
      %v70 = vpop.permute.xlu0 %69
      %v72 = vmax.f32 %v68, %v70
      %v73 = vld [vmem:[%s1] sm:$0xff]
      %v74 = vld [vmem:[%s1 + $0x8] sm:$0xff]
      %v75 = vld [vmem:[%s1 + $0x10] sm:$0xff]
      %v76 = vld [vmem:[%s1 + $0x18] sm:$0xff]
      %v77 = vperm.slane %v57, 0
      %vm78 = vcmask 261120
      %v80 = vsel %vm78, %v72, 0
      %82 = vmatpush.msra.mxu0 0.0
      %83 = vmatpush.msra.mxu0 0.0
      %84 = vmatpush.msra.mxu0 0.0
      %85 = vmatpush.msra.mxu0 0.0
      %86 = vmatpush.msra.mxu0 0.0
      %87 = vmatpush.msra.mxu0 0.0
      %88 = vmatpush.msra.mxu0 0.0
      %89 = vmatpush.msra.mxu0 0.0
      %90 = vmatpush.msra.mxu0 0.0
      %91 = vmatpush.msra.mxu0 0.0
      %92 = vmatpush.msra.mxu0 0.0
      %93 = vmatpush.msra.mxu0 0.0
      %94 = vmatpush.msra.mxu0 %v76
      %95 = vmatpush.msra.mxu0 %v75
      %96 = vmatpush.msra.mxu0 %v74
      %97 = vmatpush.msra.mxu0 %v73
      %98 = vmatmul.f32.gmra.mxu0 %v80
      %v99 = vpop.f32.mrf.mxu0
      %v100 = vadd.f32 %v77, %v99
      %101 = vdwg.mxu0
      %vm102 = vcmask 123904
      %v103 = vsel %vm102, %v100, 0.0
      %104 = vadd.xlane.f32.xlu0 %v103
      %v105 = vpop.xlane.xlu0 %104
      %v106 = vrcp.pop 16.0
      %v107 = vmul.f32 16.0, %v106
      %v108 = vsub.f32 1.0, %v107
      %v109 = vmul.f32 %v106, %v108
      %v110 = vadd.f32 %v106, %v109
      %vm111 = vweird.f32 %v106
      %v112 = vsel %vm111, %v106, %v110
      %v113 = vmul.f32 %v105, %v112
      %v114 = vsub.f32 %v100, %v113
      %v115 = vmul.f32 %v114, %v114
      %v116 = vsel %vm102, %v115, 0.0
      %117 = vadd.xlane.f32.xlu0 %v116
      %v118 = vpop.xlane.xlu0 %117
      %v119 = vmul.f32 %v118, %v112
      %v120 = vadd.f32 %v119, 1e-05
      %v121 = vrsqrt.pop %v120
      %v122 = vmul.f32 %v121, %v120
      %v123 = vmul.f32 %v122, %v121
      %v124 = vmul.f32 0.5, %v123
      %v125 = vsub.f32 1.5, %v124
      %v126 = vmul.f32 %v121, %v125
      %vm127 = vweird.f32 %v120
      %vm128 = vweird.f32 %v121
      %vm129 = vmor %vm127, %vm128
      %v130 = vsel %vm129, %v121, %v126
      %v131 = vmul.f32 %v114, %v130
      %v132 = vperm.slane %v57, 1
      %v133 = vmul.f32 %v131, %v132
      %v134 = vperm.slane %v57, 2
      %v135 = vadd.f32 %v133, %v134
      %vm136 = vcmp.ge.f32.partialorder %v135, 0.0
      %v137 = vmul.f32 %v135, 0.01
      %v138 = vsel %vm136, %v135, %v137
      %v139 = vld [vmem:[%s2] sm:$0xff]
      %v140 = vld [vmem:[%s2 + $0x8] sm:$0xff]
      %v141 = vperm.slane %v57, 3
      %vm142 = vcmask 130048
      %v144 = vsel %vm142, %v138, 0
      %146 = vmatpush.msra.mxu0 0.0
      %147 = vmatpush.msra.mxu0 0.0
      %148 = vmatpush.msra.mxu0 0.0
      %149 = vmatpush.msra.mxu0 0.0
      %150 = vmatpush.msra.mxu0 0.0
      %151 = vmatpush.msra.mxu0 0.0
      %152 = vmatpush.msra.mxu0 0.0
      %153 = vmatpush.msra.mxu0 0.0
      %154 = vmatpush.msra.mxu0 0.0
      %155 = vmatpush.msra.mxu0 0.0
      %156 = vmatpush.msra.mxu0 0.0
      %157 = vmatpush.msra.mxu0 0.0
      %158 = vmatpush.msra.mxu0 0.0
      %159 = vmatpush.msra.mxu0 0.0
      %160 = vmatpush.msra.mxu0 %v140
      %161 = vmatpush.msra.mxu0 %v139
      %162 = vmatmul.f32.gmra.mxu0 %v144
      %v163 = vpop.f32.mrf.mxu0
      %v164 = vadd.f32 %v141, %v163
      %165 = vdwg.mxu0
      %vm166 = vcmask 58368
      %v167 = vsel %vm166, %v164, 0.0
      %168 = vadd.xlane.f32.xlu0 %v167
      %v169 = vpop.xlane.xlu0 %168
      %v170 = vrcp.pop 8.0
      %v171 = vmul.f32 8.0, %v170
      %v172 = vsub.f32 1.0, %v171
      %v173 = vmul.f32 %v170, %v172
      %v174 = vadd.f32 %v170, %v173
      %vm175 = vweird.f32 %v170
      %v176 = vsel %vm175, %v170, %v174
      %v177 = vmul.f32 %v169, %v176
      %v178 = vsub.f32 %v164, %v177
      %v179 = vmul.f32 %v178, %v178
      %v180 = vsel %vm166, %v179, 0.0
      %181 = vadd.xlane.f32.xlu0 %v180
      %v182 = vpop.xlane.xlu0 %181
      %v183 = vmul.f32 %v182, %v176
      %v184 = vadd.f32 %v183, 1e-05
      %v185 = vrsqrt.pop %v184
      %v186 = vmul.f32 %v185, %v184
      %v187 = vmul.f32 %v186, %v185
      %v188 = vmul.f32 0.5, %v187
      %v189 = vsub.f32 1.5, %v188
      %v190 = vmul.f32 %v185, %v189
      %vm191 = vweird.f32 %v184
      %vm192 = vweird.f32 %v185
      %vm193 = vmor %vm191, %vm192
      %v194 = vsel %vm193, %v185, %v190
      %v195 = vmul.f32 %v178, %v194
      %v196 = vperm.slane %v57, 4
      %v197 = vmul.f32 %v195, %v196
      %v198 = vperm.slane %v57, 5
      %v199 = vadd.f32 %v197, %v198
      %vm200 = vcmp.ge.f32.partialorder %v199, 0.0
      %v201 = vmul.f32 %v199, 0.01
      %v202 = vsel %vm200, %v199, %v201
      %v203 = vld [vmem:[%s3] sm:$0xff]
      %v204 = vperm.slane %v57, 6
      %vm205 = vcmask 64512
      %v207 = vsel %vm205, %v202, 0
      %209 = vmatpush.msra.mxu0 0.0
      %210 = vmatpush.msra.mxu0 0.0
      %211 = vmatpush.msra.mxu0 0.0
      %212 = vmatpush.msra.mxu0 0.0
      %213 = vmatpush.msra.mxu0 0.0
      %214 = vmatpush.msra.mxu0 0.0
      %215 = vmatpush.msra.mxu0 0.0
      %216 = vmatpush.msra.mxu0 0.0
      %217 = vmatpush.msra.mxu0 0.0
      %218 = vmatpush.msra.mxu0 0.0
      %219 = vmatpush.msra.mxu0 0.0
      %220 = vmatpush.msra.mxu0 0.0
      %221 = vmatpush.msra.mxu0 0.0
      %222 = vmatpush.msra.mxu0 0.0
      %223 = vmatpush.msra.mxu0 0.0
      %224 = vmatpush.msra.mxu0 %v203
      %225 = vmatmul.f32.gmra.mxu0 %v207
      %v226 = vpop.f32.mrf.mxu0
      %v227 = vadd.f32 %v204, %v226
      %228 = vdwg.mxu0
      %vm229 = vcmask 25600
      %v230 = vsel %vm229, %v227, 0.0
      %231 = vadd.xlane.f32.xlu0 %v230
      %v232 = vpop.xlane.xlu0 %231
      %v233 = vrcp.pop 4.0
      %v234 = vmul.f32 4.0, %v233
      %v235 = vsub.f32 1.0, %v234
      %v236 = vmul.f32 %v233, %v235
      %v237 = vadd.f32 %v233, %v236
      %vm238 = vweird.f32 %v233
      %v239 = vsel %vm238, %v233, %v237
      %v240 = vmul.f32 %v232, %v239
      %v241 = vsub.f32 %v227, %v240
      %v242 = vmul.f32 %v241, %v241
      %v243 = vsel %vm229, %v242, 0.0
      %244 = vadd.xlane.f32.xlu0 %v243
      %v245 = vpop.xlane.xlu0 %244
      %v246 = vmul.f32 %v245, %v239
      %v247 = vadd.f32 %v246, 1e-05
      %v248 = vrsqrt.pop %v247
      %v249 = vmul.f32 %v248, %v247
      %v250 = vmul.f32 %v249, %v248
      %v251 = vmul.f32 0.5, %v250
      %v252 = vsub.f32 1.5, %v251
      %v253 = vmul.f32 %v248, %v252
      %vm254 = vweird.f32 %v247
      %vm255 = vweird.f32 %v248
      %vm256 = vmor %vm254, %vm255
      %v257 = vsel %vm256, %v248, %v253
      %v258 = vmul.f32 %v241, %v257
      %v259 = vperm.slane %v57, 7
      %v260 = vmul.f32 %v258, %v259
      %v261 = vperm.slane %v58, 0
      %v262 = vadd.f32 %v260, %v261
      %vm263 = vcmp.ge.f32.partialorder %v262, 0.0
      %v264 = vmul.f32 %v262, 0.01
      %v265 = vsel %vm263, %v262, %v264
      %v266 = vld [vmem:[%s4] sm:$0xf]
      %v267 = vperm.slane %v58, 1
      %vm268 = vcmask 31744
      %v270 = vsel %vm268, %v265, 0
      %vm272 = vcmask 1043456
      %v274 = vsel %vm272, %v266, 0
      %276 = vmatpush.msra.mxu0 0.0
      %277 = vmatpush.msra.mxu0 0.0
      %278 = vmatpush.msra.mxu0 0.0
      %279 = vmatpush.msra.mxu0 0.0
      %280 = vmatpush.msra.mxu0 0.0
      %281 = vmatpush.msra.mxu0 0.0
      %282 = vmatpush.msra.mxu0 0.0
      %283 = vmatpush.msra.mxu0 0.0
      %284 = vmatpush.msra.mxu0 0.0
      %285 = vmatpush.msra.mxu0 0.0
      %286 = vmatpush.msra.mxu0 0.0
      %287 = vmatpush.msra.mxu0 0.0
      %288 = vmatpush.msra.mxu0 0.0
      %289 = vmatpush.msra.mxu0 0.0
      %290 = vmatpush.msra.mxu0 0.0
      %291 = vmatpush.msra.mxu0 %v274
      %292 = vmatmul.f32.gmra.mxu0 %v270
      %v293 = vpop.f32.mrf.mxu0
      %v294 = vadd.f32 %v267, %v293
      %295 = vdwg.mxu0
      %v296 = vmul.f32 %v294, %v294
      %v297 = vsel %vm229, %v296, 0.0
      %298 = vadd.xlane.f32.xlu0 %v297
      %v299 = vpop.xlane.xlu0 %298
      %v300 = vrsqrt.pop %v299
      %v301 = vmul.f32 %v300, %v299
      %v302 = vmul.f32 %v301, %v300
      %v303 = vmul.f32 0.5, %v302
      %v304 = vsub.f32 1.5, %v303
      %v305 = vmul.f32 %v300, %v304
      %vm306 = vweird.f32 %v299
      %vm307 = vweird.f32 %v300
      %vm308 = vmor %vm306, %vm307
      %v309 = vsel %vm308, %v300, %v305
      %v310 = vlaneseq
      %v311 = vand.u32 %v310, 127
      %vm312 = vcmp.lt.s32.totalorder %v311, 4
      %v313 = vmul.f32 %v294, %v309
      %v314 = vsel %vm312, %v313, %v294
      %315 = vst.msk [vmem:[#allocation3] sm:$0x3] %vm166, %v314
    $region33: #{tpu_custom_call.1} parent=1 // pred_fallthru
      _
    // Predicated region
    $region34: #{tpu_custom_call.1} parent=1 // pred_check
      _
    $region35: #{tpu_custom_call.1} parent=1 // pred_check_branch
      %317 = sbr.rel (0) target = $region37
    $region36: #{tpu_custom_call.1} parent=1 // pred_region
      %319 = vsyncadd [#allocation4], 0
      %s321 = sshll.u32 [#allocation3], 4
      %s322 = int_to_ptr.vmem [resolvable:$true] %s321
      %s323 = sshll.u32 %s6, 4
      %s324 = int_to_ptr.hbm [resolvable:$true] %s323
      %326 = dma.vmem_to_hbm [thread:$0]  %s322, 32, %s324, [#allocation4]
    $region37: #{tpu_custom_call.1} parent=1 // pred_fallthru
      _
    // Predicated region
    $region38: #{tpu_custom_call.1} parent=1 // pred_check
      _
    $region39: #{tpu_custom_call.1} parent=1 // pred_check_branch
      %328 = sbr.rel (0) target = $region41
    $region40: #{tpu_custom_call.1} parent=1 // pred_region
      %330 = dma.done [#allocation4], 32
    $region41: #{tpu_custom_call.1} parent=1 // pred_fallthru
      _
    %331 = vsyncpa [#allocation4], 1

</llo_original>
